<compile_context>
chip_gen: v7x
topology: tpu7x:2x2x1
jax: 0.10.0
libtpu: 0.0.40
codegen_flags: <defaults>
</compile_context>

<pallas_src>
import jax
import jax.numpy as jnp
from jax.experimental import pallas as pl
from jax.experimental.pallas import tpu as pltpu


# --------------------------------------------------------------------------- #
# Kernel
# --------------------------------------------------------------------------- #
def _sigmoid_eup(x):
    # sigmoid(x) = 0.5 * (tanh(x/2) + 1): one EUP op per gate (vs exp + recip).
    return 0.5 * (jnp.tanh(0.5 * x) + 1.0)


def gru_encoder_kernel(x_ref,      # (T, H)  pre-gathered embeddings (f32 or bf16)
                       w_ih_ref,   # (H, 3H) input projection  [r|z|n]
                       w_hh_ref,   # (H, 3H) hidden projection [r|z|n]
                       b_ih_ref,   # (1, 3H) f32
                       b_hh_ref,   # (1, 3H) f32
                       h0_ref,     # (1, H)  f32 initial hidden
                       out_ref):   # (T, H)  f32 per-step hidden states
    T, H = x_ref.shape
    f32 = jnp.float32

    # All T input projections in one lane/sublane-dense MXU matmul (f32 accumulate).
    gi_all = (jnp.dot(x_ref[...], w_ih_ref[...], preferred_element_type=f32)
              + b_ih_ref[...].astype(f32))                       # (T, 3H)

    w_hh = w_hh_ref[...]
    b_hh = b_hh_ref[...].astype(f32)

    h = h0_ref[...].astype(f32)                                  # (1, H)
    hs = []
    # T is a compile-time constant (whole sequence in one invocation) -> fully
    # unrolled; all slices / stores below are static.
    for t in range(T):
        gi = gi_all[t:t + 1, :]                                  # (1, 3H) static view
        gh = (jnp.dot(h.astype(w_hh.dtype), w_hh, preferred_element_type=f32)
              + b_hh)                                            # (1, 3H)

        i_r, i_z, i_n = gi[:, 0:H], gi[:, H:2 * H], gi[:, 2 * H:3 * H]
        h_r, h_z, h_n = gh[:, 0:H], gh[:, H:2 * H], gh[:, 2 * H:3 * H]

        r = _sigmoid_eup(i_r + h_r)
        z = _sigmoid_eup(i_z + h_z)
        n = jnp.tanh(i_n + r * h_n)
        h = (1.0 - z) * n + z * h                                # f32 gate math
        hs.append(h)

    # Single lane-dense store of the whole (T, H) output slab.
    out_ref[...] = jnp.concatenate(hs, axis=0).astype(out_ref.dtype)


# --------------------------------------------------------------------------- #
# Wrappers
# --------------------------------------------------------------------------- #
def encoder_rnn_sequence(tokens, hidden0, params):
    """Run the encoder GRU over a whole token sequence with ONE pallas_call.

    tokens : (T,)      int32 word indices
    hidden0: (1, 1, H) f32 initial hidden state
    returns (outputs (T, 1, H) f32, hidden (1, 1, H) f32) — identical to calling
    the PyTorch EncoderRNN.forward once per token and stacking the outputs.
    """
    emb, w_ih, w_hh = params["embedding"], params["w_ih"], params["w_hh"]
    b_ih, b_hh = params["b_ih"], params["b_hh"]
    V, H = emb.shape
    T = tokens.shape[0]

    # Clamp token ids (DMA/gather safety; PyTorch would raise instead).
    tokens = jnp.clip(tokens.astype(jnp.int32), 0, V - 1)
    # Pre-gather embeddings: one contiguous (T, H) block instead of T row DMAs.
    x = jnp.take(emb, tokens, axis=0)
    h0 = hidden0.reshape(1, H).astype(jnp.float32)

    vmem = pltpu.MemorySpace.VMEM
    outputs = pl.pallas_call(
        gru_encoder_kernel,
        out_shape=jax.ShapeDtypeStruct((T, H), jnp.float32),
        in_specs=[pl.BlockSpec(memory_space=vmem) for _ in range(6)],
        out_specs=pl.BlockSpec(memory_space=vmem),
        compiler_params=pltpu.CompilerParams(vmem_limit_bytes=32 * 1024 * 1024),
    )(x, w_ih, w_hh, b_ih, b_hh, h0)

    outputs = outputs.reshape(T, 1, H)
    hidden = outputs[T - 1:T]              # last GRU output == final hidden state
    return outputs, hidden


def encoder_rnn_forward(token, hidden, params):
    """Single-step forward, matching PyTorch EncoderRNN.forward semantics.

    token: (1,) int32; hidden: (1, 1, H) f32. Returns (output (1,1,H), hidden (1,1,H)).
    """
    out, hid = encoder_rnn_sequence(token.reshape(1), hidden, params)
    return out.reshape(1, 1, -1), hid


# --------------------------------------------------------------------------- #
# Params + pure-JAX reference
# --------------------------------------------------------------------------- #
def make_params(key, input_size, hidden_size):
    """PyTorch-like init (N(0,1) embedding, U(-k,k) GRU). Weights stored (H, 3H),
    i.e. transposed vs torch's (3H, H), so we compute x @ W directly."""
    k_emb, k1, k2, k3, k4 = jax.random.split(key, 5)
    H = hidden_size
    k = 1.0 / jnp.sqrt(H)
    return {
        "embedding": jax.random.normal(k_emb, (input_size, H), jnp.float32),
        "w_ih": jax.random.uniform(k1, (H, 3 * H), jnp.float32, -k, k),
        "w_hh": jax.random.uniform(k2, (H, 3 * H), jnp.float32, -k, k),
        "b_ih": jax.random.uniform(k3, (1, 3 * H), jnp.float32, -k, k),
        "b_hh": jax.random.uniform(k4, (1, 3 * H), jnp.float32, -k, k),
    }


def cast_params_for_matmul(params, dtype):
    """bf16-store the matmul operands (embedding / W_ih / W_hh) — halves VMEM &
    HBM->VMEM DMA on v6e/v7x; biases and gate math stay f32 (v5e-friendly)."""
    p = dict(params)
    for name in ("embedding", "w_ih", "w_hh"):
        p[name] = params[name].astype(dtype)
    return p


def _reference_step(params, h, tok):
    H = h.shape[-1]
    hp = jax.lax.Precision.HIGHEST
    x = params["embedding"][tok].reshape(1, H)
    gi = jnp.dot(x, params["w_ih"], precision=hp) + params["b_ih"]
    gh = jnp.dot(h, params["w_hh"], precision=hp) + params["b_hh"]
    i_r, i_z, i_n = gi[:, :H], gi[:, H:2 * H], gi[:, 2 * H:]
    h_r, h_z, h_n = gh[:, :H], gh[:, H:2 * H], gh[:, 2 * H:]
    r = jax.nn.sigmoid(i_r + h_r)
    z = jax.nn.sigmoid(i_z + h_z)
    n = jnp.tanh(i_n + r * h_n)
    return (1.0 - z) * n + z * h


def reference_sequence(tokens, hidden0, params):
    """Pure-JAX reference: run the GRU cell step-by-step (PyTorch semantics)."""
    H = hidden0.shape[-1]
    h = hidden0.reshape(1, H)
    outs = []
    for i in range(tokens.shape[0]):
        h = _reference_step(params, h, tokens[i])
        outs.append(h)
    return jnp.stack(outs, axis=0), h.reshape(1, 1, H)


# --------------------------------------------------------------------------- #
# Demo / self-check
# --------------------------------------------------------------------------- #
if __name__ == "__main__":
    INPUT_SIZE = 64     # vocab size
    HIDDEN = 32         # hidden_size
    SEQ_LEN = 8         # encoder time-steps fused into one kernel call

    key = jax.random.PRNGKey(0)
    pkey, tkey = jax.random.split(key)
    params = make_params(pkey, INPUT_SIZE, HIDDEN)

    tokens = jax.random.randint(tkey, (SEQ_LEN,), 0, INPUT_SIZE, dtype=jnp.int32)
    hidden0 = jnp.zeros((1, 1, HIDDEN), dtype=jnp.float32)   # init_hidden()

    # Full-sequence encoder: one pallas_call for all T steps (f32 path).
    outs, hid = encoder_rnn_sequence(tokens, hidden0, params)
    outs = jax.block_until_ready(outs)
    hid = jax.block_until_ready(hid)

    ref_outs, ref_hid = reference_sequence(tokens, hidden0, params)
    assert outs.shape == (SEQ_LEN, 1, HIDDEN) and hid.shape == (1, 1, HIDDEN)
    assert jnp.allclose(outs, ref_outs, atol=1e-5, rtol=1e-5)
    assert jnp.allclose(hid, ref_hid, atol=1e-5, rtol=1e-5)

    # Single-step path == the PyTorch module's forward() exactly.
    out1, hid1 = encoder_rnn_forward(tokens[:1], hidden0, params)
    out1 = jax.block_until_ready(out1)
    hid1 = jax.block_until_ready(hid1)
    ref_out1, ref_hid1 = reference_sequence(tokens[:1], hidden0, params)
    assert out1.shape == (1, 1, HIDDEN) and hid1.shape == (1, 1, HIDDEN)
    assert jnp.allclose(out1, ref_out1, atol=1e-5, rtol=1e-5)
    assert jnp.allclose(hid1, ref_hid1, atol=1e-5, rtol=1e-5)

    # bf16-stored matmul operands (v6e/v7x path): f32 accumulate + f32 gates,
    # checked loosely against the f32 reference.
    bf16_params = cast_params_for_matmul(params, jnp.bfloat16)
    outs_bf, hid_bf = encoder_rnn_sequence(tokens, hidden0, bf16_params)
    outs_bf = jax.block_until_ready(outs_bf)
    hid_bf = jax.block_until_ready(hid_bf)
    assert jnp.allclose(outs_bf, ref_outs, atol=1e-1, rtol=1e-1)
    assert jnp.allclose(hid_bf, ref_hid, atol=1e-1, rtol=1e-1)

    print("KERNEL_OK")
</pallas_src>

<mosaic_0001>
module attributes {stable_mosaic.version = 11 : i64} {
  func.func @gru_encoder_kernel(%arg0: memref<8x32xf32, #tpu.memory_space<vmem>>, %arg1: memref<32x96xf32, #tpu.memory_space<vmem>>, %arg2: memref<32x96xf32, #tpu.memory_space<vmem>>, %arg3: memref<1x96xf32, #tpu.memory_space<vmem>>, %arg4: memref<1x96xf32, #tpu.memory_space<vmem>>, %arg5: memref<1x32xf32, #tpu.memory_space<vmem>>, %arg6: memref<8x32xf32, #tpu.memory_space<vmem>>) attributes {dimension_semantics = [], scalar_prefetch = 0 : i64, scratch_operands = 0 : i64, tpu.core_type = #tpu.core_type<tc>} {
    %c0 = arith.constant 0 : index
    %c0_0 = arith.constant 0 : index
    %0 = vector.load %arg0[%c0, %c0_0] : memref<8x32xf32, #tpu.memory_space<vmem>>, vector<8x32xf32>
    %c0_1 = arith.constant 0 : index
    %c0_2 = arith.constant 0 : index
    %1 = vector.load %arg1[%c0_1, %c0_2] : memref<32x96xf32, #tpu.memory_space<vmem>>, vector<32x96xf32>
    %cst = arith.constant dense<0.000000e+00> : vector<8x96xf32>
    %2 = tpu.matmul %0, %1, %cst {dimension_numbers = #tpu.dot_dimension_numbers<[1], [0], [0], [1], [0, 0, 1, 1], [], []>} : vector<8x32xf32>, vector<32x96xf32>, vector<8x96xf32> -> vector<8x96xf32>
    %c0_3 = arith.constant 0 : index
    %c0_4 = arith.constant 0 : index
    %3 = vector.load %arg3[%c0_3, %c0_4] : memref<1x96xf32, #tpu.memory_space<vmem>>, vector<1x96xf32>
    %4 = vector.broadcast %3 : vector<1x96xf32> to vector<8x96xf32>
    %5 = arith.addf %2, %4 : vector<8x96xf32>
    %c0_5 = arith.constant 0 : index
    %c0_6 = arith.constant 0 : index
    %6 = vector.load %arg2[%c0_5, %c0_6] : memref<32x96xf32, #tpu.memory_space<vmem>>, vector<32x96xf32>
    %c0_7 = arith.constant 0 : index
    %c0_8 = arith.constant 0 : index
    %7 = vector.load %arg4[%c0_7, %c0_8] : memref<1x96xf32, #tpu.memory_space<vmem>>, vector<1x96xf32>
    %c0_9 = arith.constant 0 : index
    %c0_10 = arith.constant 0 : index
    %8 = vector.load %arg5[%c0_9, %c0_10] : memref<1x32xf32, #tpu.memory_space<vmem>>, vector<1x32xf32>
    %9 = vector.extract_strided_slice %5 {offsets = [0, 0], sizes = [1, 96], strides = [1, 1]} : vector<8x96xf32> to vector<1x96xf32>
    %cst_11 = arith.constant dense<0.000000e+00> : vector<1x96xf32>
    %10 = tpu.matmul %8, %6, %cst_11 {dimension_numbers = #tpu.dot_dimension_numbers<[1], [0], [0], [1], [0, 0, 1, 1], [], []>} : vector<1x32xf32>, vector<32x96xf32>, vector<1x96xf32> -> vector<1x96xf32>
    %11 = arith.addf %10, %7 : vector<1x96xf32>
    %12 = vector.extract_strided_slice %9 {offsets = [0, 0], sizes = [1, 32], strides = [1, 1]} : vector<1x96xf32> to vector<1x32xf32>
    %13 = vector.extract_strided_slice %9 {offsets = [0, 32], sizes = [1, 32], strides = [1, 1]} : vector<1x96xf32> to vector<1x32xf32>
    %14 = vector.extract_strided_slice %9 {offsets = [0, 64], sizes = [1, 32], strides = [1, 1]} : vector<1x96xf32> to vector<1x32xf32>
    %15 = vector.extract_strided_slice %11 {offsets = [0, 0], sizes = [1, 32], strides = [1, 1]} : vector<1x96xf32> to vector<1x32xf32>
    %16 = vector.extract_strided_slice %11 {offsets = [0, 32], sizes = [1, 32], strides = [1, 1]} : vector<1x96xf32> to vector<1x32xf32>
    %17 = vector.extract_strided_slice %11 {offsets = [0, 64], sizes = [1, 32], strides = [1, 1]} : vector<1x96xf32> to vector<1x32xf32>
    %18 = arith.addf %12, %15 : vector<1x32xf32>
    %cst_12 = arith.constant 5.000000e-01 : f32
    %19 = vector.broadcast %cst_12 : f32 to vector<1x32xf32>
    %20 = arith.mulf %19, %18 : vector<1x32xf32>
    %21 = math.tanh %20 : vector<1x32xf32>
    %cst_13 = arith.constant 1.000000e+00 : f32
    %22 = vector.broadcast %cst_13 : f32 to vector<1x32xf32>
    %23 = arith.addf %21, %22 : vector<1x32xf32>
    %cst_14 = arith.constant 5.000000e-01 : f32
    %24 = vector.broadcast %cst_14 : f32 to vector<1x32xf32>
    %25 = arith.mulf %24, %23 : vector<1x32xf32>
    %26 = arith.addf %13, %16 : vector<1x32xf32>
    %cst_15 = arith.constant 5.000000e-01 : f32
    %27 = vector.broadcast %cst_15 : f32 to vector<1x32xf32>
    %28 = arith.mulf %27, %26 : vector<1x32xf32>
    %29 = math.tanh %28 : vector<1x32xf32>
    %cst_16 = arith.constant 1.000000e+00 : f32
    %30 = vector.broadcast %cst_16 : f32 to vector<1x32xf32>
    %31 = arith.addf %29, %30 : vector<1x32xf32>
    %cst_17 = arith.constant 5.000000e-01 : f32
    %32 = vector.broadcast %cst_17 : f32 to vector<1x32xf32>
    %33 = arith.mulf %32, %31 : vector<1x32xf32>
    %34 = arith.mulf %25, %17 : vector<1x32xf32>
    %35 = arith.addf %14, %34 : vector<1x32xf32>
    %36 = math.tanh %35 : vector<1x32xf32>
    %cst_18 = arith.constant 1.000000e+00 : f32
    %37 = vector.broadcast %cst_18 : f32 to vector<1x32xf32>
    %38 = arith.subf %37, %33 : vector<1x32xf32>
    %39 = arith.mulf %38, %36 : vector<1x32xf32>
    %40 = arith.mulf %33, %8 : vector<1x32xf32>
    %41 = arith.addf %39, %40 : vector<1x32xf32>
    %42 = vector.extract_strided_slice %5 {offsets = [1, 0], sizes = [1, 96], strides = [1, 1]} : vector<8x96xf32> to vector<1x96xf32>
    %cst_19 = arith.constant dense<0.000000e+00> : vector<1x96xf32>
    %43 = tpu.matmul %41, %6, %cst_19 {dimension_numbers = #tpu.dot_dimension_numbers<[1], [0], [0], [1], [0, 0, 1, 1], [], []>} : vector<1x32xf32>, vector<32x96xf32>, vector<1x96xf32> -> vector<1x96xf32>
    %44 = arith.addf %43, %7 : vector<1x96xf32>
    %45 = vector.extract_strided_slice %42 {offsets = [0, 0], sizes = [1, 32], strides = [1, 1]} : vector<1x96xf32> to vector<1x32xf32>
    %46 = vector.extract_strided_slice %42 {offsets = [0, 32], sizes = [1, 32], strides = [1, 1]} : vector<1x96xf32> to vector<1x32xf32>
    %47 = vector.extract_strided_slice %42 {offsets = [0, 64], sizes = [1, 32], strides = [1, 1]} : vector<1x96xf32> to vector<1x32xf32>
    %48 = vector.extract_strided_slice %44 {offsets = [0, 0], sizes = [1, 32], strides = [1, 1]} : vector<1x96xf32> to vector<1x32xf32>
    %49 = vector.extract_strided_slice %44 {offsets = [0, 32], sizes = [1, 32], strides = [1, 1]} : vector<1x96xf32> to vector<1x32xf32>
    %50 = vector.extract_strided_slice %44 {offsets = [0, 64], sizes = [1, 32], strides = [1, 1]} : vector<1x96xf32> to vector<1x32xf32>
    %51 = arith.addf %45, %48 : vector<1x32xf32>
    %cst_20 = arith.constant 5.000000e-01 : f32
    %52 = vector.broadcast %cst_20 : f32 to vector<1x32xf32>
    %53 = arith.mulf %52, %51 : vector<1x32xf32>
    %54 = math.tanh %53 : vector<1x32xf32>
    %cst_21 = arith.constant 1.000000e+00 : f32
    %55 = vector.broadcast %cst_21 : f32 to vector<1x32xf32>
    %56 = arith.addf %54, %55 : vector<1x32xf32>
    %cst_22 = arith.constant 5.000000e-01 : f32
    %57 = vector.broadcast %cst_22 : f32 to vector<1x32xf32>
    %58 = arith.mulf %57, %56 : vector<1x32xf32>
    %59 = arith.addf %46, %49 : vector<1x32xf32>
    %cst_23 = arith.constant 5.000000e-01 : f32
    %60 = vector.broadcast %cst_23 : f32 to vector<1x32xf32>
    %61 = arith.mulf %60, %59 : vector<1x32xf32>
    %62 = math.tanh %61 : vector<1x32xf32>
    %cst_24 = arith.constant 1.000000e+00 : f32
    %63 = vector.broadcast %cst_24 : f32 to vector<1x32xf32>
    %64 = arith.addf %62, %63 : vector<1x32xf32>
    %cst_25 = arith.constant 5.000000e-01 : f32
    %65 = vector.broadcast %cst_25 : f32 to vector<1x32xf32>
    %66 = arith.mulf %65, %64 : vector<1x32xf32>
    %67 = arith.mulf %58, %50 : vector<1x32xf32>
    %68 = arith.addf %47, %67 : vector<1x32xf32>
    %69 = math.tanh %68 : vector<1x32xf32>
    %cst_26 = arith.constant 1.000000e+00 : f32
    %70 = vector.broadcast %cst_26 : f32 to vector<1x32xf32>
    %71 = arith.subf %70, %66 : vector<1x32xf32>
    %72 = arith.mulf %71, %69 : vector<1x32xf32>
    %73 = arith.mulf %66, %41 : vector<1x32xf32>
    %74 = arith.addf %72, %73 : vector<1x32xf32>
    %75 = vector.extract_strided_slice %5 {offsets = [2, 0], sizes = [1, 96], strides = [1, 1]} : vector<8x96xf32> to vector<1x96xf32>
    %cst_27 = arith.constant dense<0.000000e+00> : vector<1x96xf32>
    %76 = tpu.matmul %74, %6, %cst_27 {dimension_numbers = #tpu.dot_dimension_numbers<[1], [0], [0], [1], [0, 0, 1, 1], [], []>} : vector<1x32xf32>, vector<32x96xf32>, vector<1x96xf32> -> vector<1x96xf32>
    %77 = arith.addf %76, %7 : vector<1x96xf32>
    %78 = vector.extract_strided_slice %75 {offsets = [0, 0], sizes = [1, 32], strides = [1, 1]} : vector<1x96xf32> to vector<1x32xf32>
    %79 = vector.extract_strided_slice %75 {offsets = [0, 32], sizes = [1, 32], strides = [1, 1]} : vector<1x96xf32> to vector<1x32xf32>
    %80 = vector.extract_strided_slice %75 {offsets = [0, 64], sizes = [1, 32], strides = [1, 1]} : vector<1x96xf32> to vector<1x32xf32>
    %81 = vector.extract_strided_slice %77 {offsets = [0, 0], sizes = [1, 32], strides = [1, 1]} : vector<1x96xf32> to vector<1x32xf32>
    %82 = vector.extract_strided_slice %77 {offsets = [0, 32], sizes = [1, 32], strides = [1, 1]} : vector<1x96xf32> to vector<1x32xf32>
    %83 = vector.extract_strided_slice %77 {offsets = [0, 64], sizes = [1, 32], strides = [1, 1]} : vector<1x96xf32> to vector<1x32xf32>
    %84 = arith.addf %78, %81 : vector<1x32xf32>
    %cst_28 = arith.constant 5.000000e-01 : f32
    %85 = vector.broadcast %cst_28 : f32 to vector<1x32xf32>
    %86 = arith.mulf %85, %84 : vector<1x32xf32>
    %87 = math.tanh %86 : vector<1x32xf32>
    %cst_29 = arith.constant 1.000000e+00 : f32
    %88 = vector.broadcast %cst_29 : f32 to vector<1x32xf32>
    %89 = arith.addf %87, %88 : vector<1x32xf32>
    %cst_30 = arith.constant 5.000000e-01 : f32
    %90 = vector.broadcast %cst_30 : f32 to vector<1x32xf32>
    %91 = arith.mulf %90, %89 : vector<1x32xf32>
    %92 = arith.addf %79, %82 : vector<1x32xf32>
    %cst_31 = arith.constant 5.000000e-01 : f32
    %93 = vector.broadcast %cst_31 : f32 to vector<1x32xf32>
    %94 = arith.mulf %93, %92 : vector<1x32xf32>
    %95 = math.tanh %94 : vector<1x32xf32>
    %cst_32 = arith.constant 1.000000e+00 : f32
    %96 = vector.broadcast %cst_32 : f32 to vector<1x32xf32>
    %97 = arith.addf %95, %96 : vector<1x32xf32>
    %cst_33 = arith.constant 5.000000e-01 : f32
    %98 = vector.broadcast %cst_33 : f32 to vector<1x32xf32>
    %99 = arith.mulf %98, %97 : vector<1x32xf32>
    %100 = arith.mulf %91, %83 : vector<1x32xf32>
    %101 = arith.addf %80, %100 : vector<1x32xf32>
    %102 = math.tanh %101 : vector<1x32xf32>
    %cst_34 = arith.constant 1.000000e+00 : f32
    %103 = vector.broadcast %cst_34 : f32 to vector<1x32xf32>
    %104 = arith.subf %103, %99 : vector<1x32xf32>
    %105 = arith.mulf %104, %102 : vector<1x32xf32>
    %106 = arith.mulf %99, %74 : vector<1x32xf32>
    %107 = arith.addf %105, %106 : vector<1x32xf32>
    %108 = vector.extract_strided_slice %5 {offsets = [3, 0], sizes = [1, 96], strides = [1, 1]} : vector<8x96xf32> to vector<1x96xf32>
    %cst_35 = arith.constant dense<0.000000e+00> : vector<1x96xf32>
    %109 = tpu.matmul %107, %6, %cst_35 {dimension_numbers = #tpu.dot_dimension_numbers<[1], [0], [0], [1], [0, 0, 1, 1], [], []>} : vector<1x32xf32>, vector<32x96xf32>, vector<1x96xf32> -> vector<1x96xf32>
    %110 = arith.addf %109, %7 : vector<1x96xf32>
    %111 = vector.extract_strided_slice %108 {offsets = [0, 0], sizes = [1, 32], strides = [1, 1]} : vector<1x96xf32> to vector<1x32xf32>
    %112 = vector.extract_strided_slice %108 {offsets = [0, 32], sizes = [1, 32], strides = [1, 1]} : vector<1x96xf32> to vector<1x32xf32>
    %113 = vector.extract_strided_slice %108 {offsets = [0, 64], sizes = [1, 32], strides = [1, 1]} : vector<1x96xf32> to vector<1x32xf32>
    %114 = vector.extract_strided_slice %110 {offsets = [0, 0], sizes = [1, 32], strides = [1, 1]} : vector<1x96xf32> to vector<1x32xf32>
    %115 = vector.extract_strided_slice %110 {offsets = [0, 32], sizes = [1, 32], strides = [1, 1]} : vector<1x96xf32> to vector<1x32xf32>
    %116 = vector.extract_strided_slice %110 {offsets = [0, 64], sizes = [1, 32], strides = [1, 1]} : vector<1x96xf32> to vector<1x32xf32>
    %117 = arith.addf %111, %114 : vector<1x32xf32>
    %cst_36 = arith.constant 5.000000e-01 : f32
    %118 = vector.broadcast %cst_36 : f32 to vector<1x32xf32>
    %119 = arith.mulf %118, %117 : vector<1x32xf32>
    %120 = math.tanh %119 : vector<1x32xf32>
    %cst_37 = arith.constant 1.000000e+00 : f32
    %121 = vector.broadcast %cst_37 : f32 to vector<1x32xf32>
    %122 = arith.addf %120, %121 : vector<1x32xf32>
    %cst_38 = arith.constant 5.000000e-01 : f32
    %123 = vector.broadcast %cst_38 : f32 to vector<1x32xf32>
    %124 = arith.mulf %123, %122 : vector<1x32xf32>
    %125 = arith.addf %112, %115 : vector<1x32xf32>
    %cst_39 = arith.constant 5.000000e-01 : f32
    %126 = vector.broadcast %cst_39 : f32 to vector<1x32xf32>
    %127 = arith.mulf %126, %125 : vector<1x32xf32>
    %128 = math.tanh %127 : vector<1x32xf32>
    %cst_40 = arith.constant 1.000000e+00 : f32
    %129 = vector.broadcast %cst_40 : f32 to vector<1x32xf32>
    %130 = arith.addf %128, %129 : vector<1x32xf32>
    %cst_41 = arith.constant 5.000000e-01 : f32
    %131 = vector.broadcast %cst_41 : f32 to vector<1x32xf32>
    %132 = arith.mulf %131, %130 : vector<1x32xf32>
    %133 = arith.mulf %124, %116 : vector<1x32xf32>
    %134 = arith.addf %113, %133 : vector<1x32xf32>
    %135 = math.tanh %134 : vector<1x32xf32>
    %cst_42 = arith.constant 1.000000e+00 : f32
    %136 = vector.broadcast %cst_42 : f32 to vector<1x32xf32>
    %137 = arith.subf %136, %132 : vector<1x32xf32>
    %138 = arith.mulf %137, %135 : vector<1x32xf32>
    %139 = arith.mulf %132, %107 : vector<1x32xf32>
    %140 = arith.addf %138, %139 : vector<1x32xf32>
    %141 = vector.extract_strided_slice %5 {offsets = [4, 0], sizes = [1, 96], strides = [1, 1]} : vector<8x96xf32> to vector<1x96xf32>
    %cst_43 = arith.constant dense<0.000000e+00> : vector<1x96xf32>
    %142 = tpu.matmul %140, %6, %cst_43 {dimension_numbers = #tpu.dot_dimension_numbers<[1], [0], [0], [1], [0, 0, 1, 1], [], []>} : vector<1x32xf32>, vector<32x96xf32>, vector<1x96xf32> -> vector<1x96xf32>
    %143 = arith.addf %142, %7 : vector<1x96xf32>
    %144 = vector.extract_strided_slice %141 {offsets = [0, 0], sizes = [1, 32], strides = [1, 1]} : vector<1x96xf32> to vector<1x32xf32>
    %145 = vector.extract_strided_slice %141 {offsets = [0, 32], sizes = [1, 32], strides = [1, 1]} : vector<1x96xf32> to vector<1x32xf32>
    %146 = vector.extract_strided_slice %141 {offsets = [0, 64], sizes = [1, 32], strides = [1, 1]} : vector<1x96xf32> to vector<1x32xf32>
    %147 = vector.extract_strided_slice %143 {offsets = [0, 0], sizes = [1, 32], strides = [1, 1]} : vector<1x96xf32> to vector<1x32xf32>
    %148 = vector.extract_strided_slice %143 {offsets = [0, 32], sizes = [1, 32], strides = [1, 1]} : vector<1x96xf32> to vector<1x32xf32>
    %149 = vector.extract_strided_slice %143 {offsets = [0, 64], sizes = [1, 32], strides = [1, 1]} : vector<1x96xf32> to vector<1x32xf32>
    %150 = arith.addf %144, %147 : vector<1x32xf32>
    %cst_44 = arith.constant 5.000000e-01 : f32
    %151 = vector.broadcast %cst_44 : f32 to vector<1x32xf32>
    %152 = arith.mulf %151, %150 : vector<1x32xf32>
    %153 = math.tanh %152 : vector<1x32xf32>
    %cst_45 = arith.constant 1.000000e+00 : f32
    %154 = vector.broadcast %cst_45 : f32 to vector<1x32xf32>
    %155 = arith.addf %153, %154 : vector<1x32xf32>
    %cst_46 = arith.constant 5.000000e-01 : f32
    %156 = vector.broadcast %cst_46 : f32 to vector<1x32xf32>
    %157 = arith.mulf %156, %155 : vector<1x32xf32>
    %158 = arith.addf %145, %148 : vector<1x32xf32>
    %cst_47 = arith.constant 5.000000e-01 : f32
    %159 = vector.broadcast %cst_47 : f32 to vector<1x32xf32>
    %160 = arith.mulf %159, %158 : vector<1x32xf32>
    %161 = math.tanh %160 : vector<1x32xf32>
    %cst_48 = arith.constant 1.000000e+00 : f32
    %162 = vector.broadcast %cst_48 : f32 to vector<1x32xf32>
    %163 = arith.addf %161, %162 : vector<1x32xf32>
    %cst_49 = arith.constant 5.000000e-01 : f32
    %164 = vector.broadcast %cst_49 : f32 to vector<1x32xf32>
    %165 = arith.mulf %164, %163 : vector<1x32xf32>
    %166 = arith.mulf %157, %149 : vector<1x32xf32>
    %167 = arith.addf %146, %166 : vector<1x32xf32>
    %168 = math.tanh %167 : vector<1x32xf32>
    %cst_50 = arith.constant 1.000000e+00 : f32
    %169 = vector.broadcast %cst_50 : f32 to vector<1x32xf32>
    %170 = arith.subf %169, %165 : vector<1x32xf32>
    %171 = arith.mulf %170, %168 : vector<1x32xf32>
    %172 = arith.mulf %165, %140 : vector<1x32xf32>
    %173 = arith.addf %171, %172 : vector<1x32xf32>
    %174 = vector.extract_strided_slice %5 {offsets = [5, 0], sizes = [1, 96], strides = [1, 1]} : vector<8x96xf32> to vector<1x96xf32>
    %cst_51 = arith.constant dense<0.000000e+00> : vector<1x96xf32>
    %175 = tpu.matmul %173, %6, %cst_51 {dimension_numbers = #tpu.dot_dimension_numbers<[1], [0], [0], [1], [0, 0, 1, 1], [], []>} : vector<1x32xf32>, vector<32x96xf32>, vector<1x96xf32> -> vector<1x96xf32>
    %176 = arith.addf %175, %7 : vector<1x96xf32>
    %177 = vector.extract_strided_slice %174 {offsets = [0, 0], sizes = [1, 32], strides = [1, 1]} : vector<1x96xf32> to vector<1x32xf32>
    %178 = vector.extract_strided_slice %174 {offsets = [0, 32], sizes = [1, 32], strides = [1, 1]} : vector<1x96xf32> to vector<1x32xf32>
    %179 = vector.extract_strided_slice %174 {offsets = [0, 64], sizes = [1, 32], strides = [1, 1]} : vector<1x96xf32> to vector<1x32xf32>
    %180 = vector.extract_strided_slice %176 {offsets = [0, 0], sizes = [1, 32], strides = [1, 1]} : vector<1x96xf32> to vector<1x32xf32>
    %181 = vector.extract_strided_slice %176 {offsets = [0, 32], sizes = [1, 32], strides = [1, 1]} : vector<1x96xf32> to vector<1x32xf32>
    %182 = vector.extract_strided_slice %176 {offsets = [0, 64], sizes = [1, 32], strides = [1, 1]} : vector<1x96xf32> to vector<1x32xf32>
    %183 = arith.addf %177, %180 : vector<1x32xf32>
    %cst_52 = arith.constant 5.000000e-01 : f32
    %184 = vector.broadcast %cst_52 : f32 to vector<1x32xf32>
    %185 = arith.mulf %184, %183 : vector<1x32xf32>
    %186 = math.tanh %185 : vector<1x32xf32>
    %cst_53 = arith.constant 1.000000e+00 : f32
    %187 = vector.broadcast %cst_53 : f32 to vector<1x32xf32>
    %188 = arith.addf %186, %187 : vector<1x32xf32>
    %cst_54 = arith.constant 5.000000e-01 : f32
    %189 = vector.broadcast %cst_54 : f32 to vector<1x32xf32>
    %190 = arith.mulf %189, %188 : vector<1x32xf32>
    %191 = arith.addf %178, %181 : vector<1x32xf32>
    %cst_55 = arith.constant 5.000000e-01 : f32
    %192 = vector.broadcast %cst_55 : f32 to vector<1x32xf32>
    %193 = arith.mulf %192, %191 : vector<1x32xf32>
    %194 = math.tanh %193 : vector<1x32xf32>
    %cst_56 = arith.constant 1.000000e+00 : f32
    %195 = vector.broadcast %cst_56 : f32 to vector<1x32xf32>
    %196 = arith.addf %194, %195 : vector<1x32xf32>
    %cst_57 = arith.constant 5.000000e-01 : f32
    %197 = vector.broadcast %cst_57 : f32 to vector<1x32xf32>
    %198 = arith.mulf %197, %196 : vector<1x32xf32>
    %199 = arith.mulf %190, %182 : vector<1x32xf32>
    %200 = arith.addf %179, %199 : vector<1x32xf32>
    %201 = math.tanh %200 : vector<1x32xf32>
    %cst_58 = arith.constant 1.000000e+00 : f32
    %202 = vector.broadcast %cst_58 : f32 to vector<1x32xf32>
    %203 = arith.subf %202, %198 : vector<1x32xf32>
    %204 = arith.mulf %203, %201 : vector<1x32xf32>
    %205 = arith.mulf %198, %173 : vector<1x32xf32>
    %206 = arith.addf %204, %205 : vector<1x32xf32>
    %207 = vector.extract_strided_slice %5 {offsets = [6, 0], sizes = [1, 96], strides = [1, 1]} : vector<8x96xf32> to vector<1x96xf32>
    %cst_59 = arith.constant dense<0.000000e+00> : vector<1x96xf32>
    %208 = tpu.matmul %206, %6, %cst_59 {dimension_numbers = #tpu.dot_dimension_numbers<[1], [0], [0], [1], [0, 0, 1, 1], [], []>} : vector<1x32xf32>, vector<32x96xf32>, vector<1x96xf32> -> vector<1x96xf32>
    %209 = arith.addf %208, %7 : vector<1x96xf32>
    %210 = vector.extract_strided_slice %207 {offsets = [0, 0], sizes = [1, 32], strides = [1, 1]} : vector<1x96xf32> to vector<1x32xf32>
    %211 = vector.extract_strided_slice %207 {offsets = [0, 32], sizes = [1, 32], strides = [1, 1]} : vector<1x96xf32> to vector<1x32xf32>
    %212 = vector.extract_strided_slice %207 {offsets = [0, 64], sizes = [1, 32], strides = [1, 1]} : vector<1x96xf32> to vector<1x32xf32>
    %213 = vector.extract_strided_slice %209 {offsets = [0, 0], sizes = [1, 32], strides = [1, 1]} : vector<1x96xf32> to vector<1x32xf32>
    %214 = vector.extract_strided_slice %209 {offsets = [0, 32], sizes = [1, 32], strides = [1, 1]} : vector<1x96xf32> to vector<1x32xf32>
    %215 = vector.extract_strided_slice %209 {offsets = [0, 64], sizes = [1, 32], strides = [1, 1]} : vector<1x96xf32> to vector<1x32xf32>
    %216 = arith.addf %210, %213 : vector<1x32xf32>
    %cst_60 = arith.constant 5.000000e-01 : f32
    %217 = vector.broadcast %cst_60 : f32 to vector<1x32xf32>
    %218 = arith.mulf %217, %216 : vector<1x32xf32>
    %219 = math.tanh %218 : vector<1x32xf32>
    %cst_61 = arith.constant 1.000000e+00 : f32
    %220 = vector.broadcast %cst_61 : f32 to vector<1x32xf32>
    %221 = arith.addf %219, %220 : vector<1x32xf32>
    %cst_62 = arith.constant 5.000000e-01 : f32
    %222 = vector.broadcast %cst_62 : f32 to vector<1x32xf32>
    %223 = arith.mulf %222, %221 : vector<1x32xf32>
    %224 = arith.addf %211, %214 : vector<1x32xf32>
    %cst_63 = arith.constant 5.000000e-01 : f32
    %225 = vector.broadcast %cst_63 : f32 to vector<1x32xf32>
    %226 = arith.mulf %225, %224 : vector<1x32xf32>
    %227 = math.tanh %226 : vector<1x32xf32>
    %cst_64 = arith.constant 1.000000e+00 : f32
    %228 = vector.broadcast %cst_64 : f32 to vector<1x32xf32>
    %229 = arith.addf %227, %228 : vector<1x32xf32>
    %cst_65 = arith.constant 5.000000e-01 : f32
    %230 = vector.broadcast %cst_65 : f32 to vector<1x32xf32>
    %231 = arith.mulf %230, %229 : vector<1x32xf32>
    %232 = arith.mulf %223, %215 : vector<1x32xf32>
    %233 = arith.addf %212, %232 : vector<1x32xf32>
    %234 = math.tanh %233 : vector<1x32xf32>
    %cst_66 = arith.constant 1.000000e+00 : f32
    %235 = vector.broadcast %cst_66 : f32 to vector<1x32xf32>
    %236 = arith.subf %235, %231 : vector<1x32xf32>
    %237 = arith.mulf %236, %234 : vector<1x32xf32>
    %238 = arith.mulf %231, %206 : vector<1x32xf32>
    %239 = arith.addf %237, %238 : vector<1x32xf32>
    %240 = vector.extract_strided_slice %5 {offsets = [7, 0], sizes = [1, 96], strides = [1, 1]} : vector<8x96xf32> to vector<1x96xf32>
    %cst_67 = arith.constant dense<0.000000e+00> : vector<1x96xf32>
    %241 = tpu.matmul %239, %6, %cst_67 {dimension_numbers = #tpu.dot_dimension_numbers<[1], [0], [0], [1], [0, 0, 1, 1], [], []>} : vector<1x32xf32>, vector<32x96xf32>, vector<1x96xf32> -> vector<1x96xf32>
    %242 = arith.addf %241, %7 : vector<1x96xf32>
    %243 = vector.extract_strided_slice %240 {offsets = [0, 0], sizes = [1, 32], strides = [1, 1]} : vector<1x96xf32> to vector<1x32xf32>
    %244 = vector.extract_strided_slice %240 {offsets = [0, 32], sizes = [1, 32], strides = [1, 1]} : vector<1x96xf32> to vector<1x32xf32>
    %245 = vector.extract_strided_slice %240 {offsets = [0, 64], sizes = [1, 32], strides = [1, 1]} : vector<1x96xf32> to vector<1x32xf32>
    %246 = vector.extract_strided_slice %242 {offsets = [0, 0], sizes = [1, 32], strides = [1, 1]} : vector<1x96xf32> to vector<1x32xf32>
    %247 = vector.extract_strided_slice %242 {offsets = [0, 32], sizes = [1, 32], strides = [1, 1]} : vector<1x96xf32> to vector<1x32xf32>
    %248 = vector.extract_strided_slice %242 {offsets = [0, 64], sizes = [1, 32], strides = [1, 1]} : vector<1x96xf32> to vector<1x32xf32>
    %249 = arith.addf %243, %246 : vector<1x32xf32>
    %cst_68 = arith.constant 5.000000e-01 : f32
    %250 = vector.broadcast %cst_68 : f32 to vector<1x32xf32>
    %251 = arith.mulf %250, %249 : vector<1x32xf32>
    %252 = math.tanh %251 : vector<1x32xf32>
    %cst_69 = arith.constant 1.000000e+00 : f32
    %253 = vector.broadcast %cst_69 : f32 to vector<1x32xf32>
    %254 = arith.addf %252, %253 : vector<1x32xf32>
    %cst_70 = arith.constant 5.000000e-01 : f32
    %255 = vector.broadcast %cst_70 : f32 to vector<1x32xf32>
    %256 = arith.mulf %255, %254 : vector<1x32xf32>
    %257 = arith.addf %244, %247 : vector<1x32xf32>
    %cst_71 = arith.constant 5.000000e-01 : f32
    %258 = vector.broadcast %cst_71 : f32 to vector<1x32xf32>
    %259 = arith.mulf %258, %257 : vector<1x32xf32>
    %260 = math.tanh %259 : vector<1x32xf32>
    %cst_72 = arith.constant 1.000000e+00 : f32
    %261 = vector.broadcast %cst_72 : f32 to vector<1x32xf32>
    %262 = arith.addf %260, %261 : vector<1x32xf32>
    %cst_73 = arith.constant 5.000000e-01 : f32
    %263 = vector.broadcast %cst_73 : f32 to vector<1x32xf32>
    %264 = arith.mulf %263, %262 : vector<1x32xf32>
    %265 = arith.mulf %256, %248 : vector<1x32xf32>
    %266 = arith.addf %245, %265 : vector<1x32xf32>
    %267 = math.tanh %266 : vector<1x32xf32>
    %cst_74 = arith.constant 1.000000e+00 : f32
    %268 = vector.broadcast %cst_74 : f32 to vector<1x32xf32>
    %269 = arith.subf %268, %264 : vector<1x32xf32>
    %270 = arith.mulf %269, %267 : vector<1x32xf32>
    %271 = arith.mulf %264, %239 : vector<1x32xf32>
    %272 = arith.addf %270, %271 : vector<1x32xf32>
    %273 = tpu.concatenate %41, %74, %107, %140, %173, %206, %239, %272 in 0 : vector<1x32xf32>, vector<1x32xf32>, vector<1x32xf32>, vector<1x32xf32>, vector<1x32xf32>, vector<1x32xf32>, vector<1x32xf32>, vector<1x32xf32> -> vector<8x32xf32>
    %c0_75 = arith.constant 0 : index
    %c0_76 = arith.constant 0 : index
    %274 = vector.load %arg6[%c0_75, %c0_76] : memref<8x32xf32, #tpu.memory_space<vmem>>, vector<8x32xf32>
    tpu.vector_store %arg6[%c0_75, %c0_76], %273 {strides = array<i32>} : memref<8x32xf32, #tpu.memory_space<vmem>>, vector<8x32xf32>,
    return
  }
}

</mosaic_0001>

<llo_original>
// kernel: tpu_custom_call.1
$region0: #{tpu_custom_call.1}
  #allocation0 [shape = 'u32[]', space=smem, size = 0x4, offset = 0x4, fixed_abs, tag = 'smem constant byte address 0x4 - core index']
  #allocation1 [shape = 'u32[144,128]{1,0:T(1,128)}', space=vmem, size = 0x12000, scoped, tag = 'internal scratch']
  %s0 = inlined_call_operand.hbm [shape: f32[8,32], index: 0, kind: input, shape index: {}]
  %s1 = inlined_call_operand.hbm [shape: f32[32,96], index: 1, kind: input, shape index: {}]
  %s2 = inlined_call_operand.hbm [shape: f32[32,96], index: 2, kind: input, shape index: {}]
  %s3 = inlined_call_operand.vmem [shape: f32[1,96], index: 3, kind: input, shape index: {}]
  %s4 = inlined_call_operand.vmem [shape: f32[1,96], index: 4, kind: input, shape index: {}]
  %s5 = inlined_call_operand.vmem [shape: f32[1,32], index: 5, kind: input, shape index: {}]
  %s6 = inlined_call_operand.hbm [shape: f32[8,32], index: 6, kind: output, shape index: {}]
  %s7 = sld [smem:[#allocation0]]
  $region46: #{tpu_custom_call.1} parent=0
    _
  %s9 = ssub.s32 1, %s7
  %s10 = scalar_select 0, %s9, %s7
  $region1: #{tpu_custom_call.1} parent=0
    #allocation2 [shape = 'u8[4096]{0}', space=vmem, size = 0x1000, scoped, tag = 'input window, operand 0, single buffered']
    #allocation3 [shape = 's32[1]{0}', space=sflag, size = 0x4, scoped, tag = 'scoped memory for tpu_custom_call.1']
    #allocation4 [shape = 's32[1]{0}', space=sflag, size = 0x4, scoped, tag = 'scoped memory for tpu_custom_call.1']
    #allocation5 [shape = 'u8[16384]{0}', space=vmem, size = 0x4000, scoped, tag = 'input window, operand 1, single buffered']
    #allocation6 [shape = 's32[1]{0}', space=sflag, size = 0x4, scoped, tag = 'scoped memory for tpu_custom_call.1']
    #allocation7 [shape = 'u8[16384]{0}', space=vmem, size = 0x4000, scoped, tag = 'input window, operand 2, single buffered']
    #allocation8 [shape = 'u8[4096]{0}', space=vmem, size = 0x1000, scoped, tag = 'output window, operand 0, single buffered']
    %11 = vsyncpa [#allocation3], 0
    %12 = vsyncpa [#allocation6], 0
    %13 = vsyncpa [#allocation4], 0
    // Predicated region
    $region2: #{tpu_custom_call.1} parent=1 // pred_check
      _
    $region3: #{tpu_custom_call.1} parent=1 // pred_check_branch
      %15 = sbr.rel (0) target = $region5
    $region4: #{tpu_custom_call.1} parent=1 // pred_region
      %s17 = ssub.s32 128, 128
      %18 = vsyncadd [#allocation3], %s17
      %s20 = sshll.u32 [#allocation2], 4
      %s21 = int_to_ptr.vmem [resolvable:$true] %s20
      %23 = dma.hbm_to_vmem [thread:$0]  %s0, 128, %s21, [#allocation3]
    $region5: #{tpu_custom_call.1} parent=1 // pred_fallthru
      _
    // Predicated region
    $region6: #{tpu_custom_call.1} parent=1 // pred_check
      _
    $region7: #{tpu_custom_call.1} parent=1 // pred_check_branch
      %25 = sbr.rel (0) target = $region9
    $region8: #{tpu_custom_call.1} parent=1 // pred_region
      %s27 = ssub.s32 512, 512
      %28 = vsyncadd [#allocation6], %s27
      %s29 = sshll.u32 [#allocation5], 4
      %s30 = int_to_ptr.vmem [resolvable:$true] %s29
      %35 = dma.hbm_to_vmem [thread:$0]  %s1, 512, %s30, [#allocation6], 128, 128, 8
    $region9: #{tpu_custom_call.1} parent=1 // pred_fallthru
      _
    // Predicated region
    $region10: #{tpu_custom_call.1} parent=1 // pred_check
      _
    $region11: #{tpu_custom_call.1} parent=1 // pred_check_branch
      %37 = sbr.rel (0) target = $region13
    $region12: #{tpu_custom_call.1} parent=1 // pred_region
      %s39 = ssub.s32 512, 512
      %40 = vsyncadd [#allocation6], %s39
      %s41 = sshll.u32 [#allocation7], 4
      %s42 = int_to_ptr.vmem [resolvable:$true] %s41
      %47 = dma.hbm_to_vmem [thread:$0]  %s2, 512, %s42, [#allocation6], 128, 128, 8
    $region13: #{tpu_custom_call.1} parent=1 // pred_fallthru
      _
    // Predicated region
    $region14: #{tpu_custom_call.1} parent=1 // pred_check
      _
    $region15: #{tpu_custom_call.1} parent=1 // pred_check_branch
      %49 = sbr.rel (0) target = $region17
    $region16: #{tpu_custom_call.1} parent=1 // pred_region
      _
    $region17: #{tpu_custom_call.1} parent=1 // pred_fallthru
      _
    // Predicated region
    $region18: #{tpu_custom_call.1} parent=1 // pred_check
      _
    $region19: #{tpu_custom_call.1} parent=1 // pred_check_branch
      %51 = sbr.rel (0) target = $region21
    $region20: #{tpu_custom_call.1} parent=1 // pred_region
      _
    $region21: #{tpu_custom_call.1} parent=1 // pred_fallthru
      _
    // Predicated region
    $region22: #{tpu_custom_call.1} parent=1 // pred_check
      _
    $region23: #{tpu_custom_call.1} parent=1 // pred_check_branch
      %53 = sbr.rel (0) target = $region25
    $region24: #{tpu_custom_call.1} parent=1 // pred_region
      _
    $region25: #{tpu_custom_call.1} parent=1 // pred_fallthru
      _
    // Predicated region
    $region26: #{tpu_custom_call.1} parent=1 // pred_check
      _
    $region27: #{tpu_custom_call.1} parent=1 // pred_check_branch
      %55 = sbr.rel (0) target = $region29
    $region28: #{tpu_custom_call.1} parent=1 // pred_region
      %56 = dma.done [#allocation3], 128
    $region29: #{tpu_custom_call.1} parent=1 // pred_fallthru
      _
    // Predicated region
    $region30: #{tpu_custom_call.1} parent=1 // pred_check
      _
    $region31: #{tpu_custom_call.1} parent=1 // pred_check_branch
      %58 = sbr.rel (0) target = $region33
    $region32: #{tpu_custom_call.1} parent=1 // pred_region
      %59 = dma.done [#allocation6], 512
    $region33: #{tpu_custom_call.1} parent=1 // pred_fallthru
      _
    // Predicated region
    $region34: #{tpu_custom_call.1} parent=1 // pred_check
      _
    $region35: #{tpu_custom_call.1} parent=1 // pred_check_branch
      %61 = sbr.rel (0) target = $region37
    $region36: #{tpu_custom_call.1} parent=1 // pred_region
      %62 = dma.done [#allocation6], 512
    $region37: #{tpu_custom_call.1} parent=1 // pred_fallthru
      _
    %v63 = vld [vmem:[#allocation2] sm:$0xff]
    %v64 = vld [vmem:[#allocation5] sm:$0xff]
    %v65 = vld [vmem:[#allocation5 + $0x8] sm:$0xff]
    %v66 = vld [vmem:[#allocation5 + $0x10] sm:$0xff]
    %v67 = vld [vmem:[#allocation5 + $0x18] sm:$0xff]
    %v68 = vld [vmem:[%s3] sm:$0x1]
    %v70 = vlaneseq
    %v71 = vshrl.u32 %v70, 7
    %v72 = vsub.s32 0, %v71
    %v73 = vrot.slane %v68, %v72
    %vm75 = vcmask 261120
    %v77 = vsel %vm75, %v63, 0
    %79 = vmatprep.subr.mxu0 0.0
    %80 = vmatpush1.msra.mxu0 %v64
    %81 = vmatprep.subr.mxu0 0.0
    %82 = vmatpush1.msra.mxu0 %v65
    %83 = vmatprep.subr.mxu0 0.0
    %84 = vmatpush1.msra.mxu0 %v66
    %85 = vmatprep.subr.mxu0 0.0
    %86 = vmatpush1.msra.mxu0 %v67
    %87 = vmatprep.subr.mxu0 0.0
    %88 = vmatpush1.msra.mxu0 0.0
    %89 = vmatprep.subr.mxu0 0.0
    %90 = vmatpush1.msra.mxu0 0.0
    %91 = vmatprep.subr.mxu0 0.0
    %92 = vmatpush1.msra.mxu0 0.0
    %93 = vmatprep.subr.mxu0 0.0
    %94 = vmatpush1.msra.mxu0 0.0
    %95 = vmatprep.subr.mxu0 0.0
    %96 = vmatpush1.msra.mxu0 0.0
    %97 = vmatprep.subr.mxu0 0.0
    %98 = vmatpush1.msra.mxu0 0.0
    %99 = vmatprep.subr.mxu0 0.0
    %100 = vmatpush1.msra.mxu0 0.0
    %101 = vmatprep.subr.mxu0 0.0
    %102 = vmatpush1.msra.mxu0 0.0
    %103 = vmatprep.subr.mxu0 0.0
    %104 = vmatpush1.msra.mxu0 0.0
    %105 = vmatprep.subr.mxu0 0.0
    %106 = vmatpush1.msra.mxu0 0.0
    %107 = vmatprep.subr.mxu0 0.0
    %108 = vmatpush1.msra.mxu0 0.0
    %109 = vmatprep.subr.mxu0 0.0
    %110 = vmatpush1.msra.mxu0 0.0
    %111 = vmatprep.subr.mxu0 0.0
    %112 = vmatpush1.msra.mxu0 0.0
    %113 = vmatprep.subr.mxu0 0.0
    %114 = vmatpush1.msra.mxu0 0.0
    %115 = vmatprep.subr.mxu0 0.0
    %116 = vmatpush1.msra.mxu0 0.0
    %117 = vmatprep.subr.mxu0 0.0
    %118 = vmatpush1.msra.mxu0 0.0
    %119 = vmatprep.subr.mxu0 0.0
    %120 = vmatpush1.msra.mxu0 0.0
    %121 = vmatprep.subr.mxu0 0.0
    %122 = vmatpush1.msra.mxu0 0.0
    %123 = vmatprep.subr.mxu0 0.0
    %124 = vmatpush1.msra.mxu0 0.0
    %125 = vmatprep.subr.mxu0 0.0
    %126 = vmatpush1.msra.mxu0 0.0
    %127 = vmatprep.subr.mxu0 0.0
    %128 = vmatpush1.msra.mxu0 0.0
    %129 = vmatprep.subr.mxu0 0.0
    %130 = vmatpush1.msra.mxu0 0.0
    %131 = vmatprep.subr.mxu0 0.0
    %132 = vmatpush1.msra.mxu0 0.0
    %133 = vmatprep.subr.mxu0 0.0
    %134 = vmatpush1.msra.mxu0 0.0
    %135 = vmatprep.subr.mxu0 0.0
    %136 = vmatpush1.msra.mxu0 0.0
    %137 = vmatprep.subr.mxu0 0.0
    %138 = vmatpush1.msra.mxu0 0.0
    %139 = vmatprep.subr.mxu0 0.0
    %140 = vmatpush1.msra.mxu0 0.0
    %141 = vmatprep.subr.mxu0 0.0
    %142 = vmatpush1.msra.mxu0 0.0
    %143 = vmatprep.mubr.f32.mxu0 0.0
    %144 = vmatmul.mubr.f32.gmra.mrb[0].mxu0 %v77
    %v145 = vpop.f32.mrb[0].mxu0
    %v146 = vadd.f32 %v73, %v145
    %v147 = vpop.f32.mrb[0].mxu0
    %148 = vdwg.mxu0
    %v149 = vld [vmem:[#allocation7] sm:$0xff]
    %v150 = vld [vmem:[#allocation7 + $0x8] sm:$0xff]
    %v151 = vld [vmem:[#allocation7 + $0x10] sm:$0xff]
    %v152 = vld [vmem:[#allocation7 + $0x18] sm:$0xff]
    %v153 = vld [vmem:[%s4] sm:$0x1]
    %v154 = vld [vmem:[%s5] sm:$0x1]
    %v156 = vsel %vm75, %v154, 0
    %158 = vmatprep.subr.mxu0 0.0
    %159 = vmatpush1.msra.mxu0 %v149
    %160 = vmatprep.subr.mxu0 0.0
    %161 = vmatpush1.msra.mxu0 %v150
    %162 = vmatprep.subr.mxu0 0.0
    %163 = vmatpush1.msra.mxu0 %v151
    %164 = vmatprep.subr.mxu0 0.0
    %165 = vmatpush1.msra.mxu0 %v152
    %166 = vmatprep.subr.mxu0 0.0
    %167 = vmatpush1.msra.mxu0 0.0
    %168 = vmatprep.subr.mxu0 0.0
    %169 = vmatpush1.msra.mxu0 0.0
    %170 = vmatprep.subr.mxu0 0.0
    %171 = vmatpush1.msra.mxu0 0.0
    %172 = vmatprep.subr.mxu0 0.0
    %173 = vmatpush1.msra.mxu0 0.0
    %174 = vmatprep.subr.mxu0 0.0
    %175 = vmatpush1.msra.mxu0 0.0
    %176 = vmatprep.subr.mxu0 0.0
    %177 = vmatpush1.msra.mxu0 0.0
    %178 = vmatprep.subr.mxu0 0.0
    %179 = vmatpush1.msra.mxu0 0.0
    %180 = vmatprep.subr.mxu0 0.0
    %181 = vmatpush1.msra.mxu0 0.0
    %182 = vmatprep.subr.mxu0 0.0
    %183 = vmatpush1.msra.mxu0 0.0
    %184 = vmatprep.subr.mxu0 0.0
    %185 = vmatpush1.msra.mxu0 0.0
    %186 = vmatprep.subr.mxu0 0.0
    %187 = vmatpush1.msra.mxu0 0.0
    %188 = vmatprep.subr.mxu0 0.0
    %189 = vmatpush1.msra.mxu0 0.0
    %190 = vmatprep.subr.mxu0 0.0
    %191 = vmatpush1.msra.mxu0 0.0
    %192 = vmatprep.subr.mxu0 0.0
    %193 = vmatpush1.msra.mxu0 0.0
    %194 = vmatprep.subr.mxu0 0.0
    %195 = vmatpush1.msra.mxu0 0.0
    %196 = vmatprep.subr.mxu0 0.0
    %197 = vmatpush1.msra.mxu0 0.0
    %198 = vmatprep.subr.mxu0 0.0
    %199 = vmatpush1.msra.mxu0 0.0
    %200 = vmatprep.subr.mxu0 0.0
    %201 = vmatpush1.msra.mxu0 0.0
    %202 = vmatprep.subr.mxu0 0.0
    %203 = vmatpush1.msra.mxu0 0.0
    %204 = vmatprep.subr.mxu0 0.0
    %205 = vmatpush1.msra.mxu0 0.0
    %206 = vmatprep.subr.mxu0 0.0
    %207 = vmatpush1.msra.mxu0 0.0
    %208 = vmatprep.subr.mxu0 0.0
    %209 = vmatpush1.msra.mxu0 0.0
    %210 = vmatprep.subr.mxu0 0.0
    %211 = vmatpush1.msra.mxu0 0.0
    %212 = vmatprep.subr.mxu0 0.0
    %213 = vmatpush1.msra.mxu0 0.0
    %214 = vmatprep.subr.mxu0 0.0
    %215 = vmatpush1.msra.mxu0 0.0
    %216 = vmatprep.subr.mxu0 0.0
    %217 = vmatpush1.msra.mxu0 0.0
    %218 = vmatprep.subr.mxu0 0.0
    %219 = vmatpush1.msra.mxu0 0.0
    %220 = vmatprep.subr.mxu0 0.0
    %221 = vmatpush1.msra.mxu0 0.0
    %222 = vmatprep.mubr.f32.mxu0 0.0
    %223 = vmatmul.mubr.f32.gmra.mrb[0].mxu0 %v156
    %v224 = vpop.f32.mrb[0].mxu0
    %v225 = vadd.f32 %v153, %v224
    %v226 = vpop.f32.mrb[0].mxu0
    %227 = vdwg.mxu0
    %v228 = vadd.f32 %v146, %v225
    %v229 = vmul.f32 %v228, 0.5
    %v230 = vtanh.pop %v229
    %v231 = vadd.f32 %v230, 1.0
    %v232 = vmul.f32 %v231, 0.5
    %234 = vrot.lane.b32.xlu0 %v225, 64
    %v235 = vpop.permute.xlu0 %234
    %v237 = vmul.f32 %v232, %v235
    %239 = vrot.lane.b32.xlu0 %v237, 64
    %v240 = vpop.permute.xlu0 %239
    %v242 = vadd.f32 %v146, %v240
    %v243 = vtanh.pop %v242
    %v244 = vsub.f32 1.0, %v232
    %246 = vrot.lane.b32.xlu0 %v243, 96
    %v247 = vpop.permute.xlu0 %246
    %v249 = vmul.f32 %v244, %v247
    %v250 = vlaneseq
    %v251 = vshrl.u32 %v250, 7
    %v252 = vsub.s32 0, %v251
    %v253 = vrot.slane %v154, %v252
    %254 = vrot.lane.b32.xlu0 %v253, 32
    %v255 = vpop.permute.xlu0 %254
    %v257 = vmul.f32 %v232, %v255
    %v258 = vadd.f32 %v249, %v257
    %260 = vrot.lane.b32.xlu0 %v258, 96
    %v261 = vpop.permute.xlu0 %260
    %v262 = vsel %vm75, %v261, 0
    %264 = vmatprep.subr.mxu0 0.0
    %265 = vmatpush1.msra.mxu0 %v149
    %266 = vmatprep.subr.mxu0 0.0
    %267 = vmatpush1.msra.mxu0 %v150
    %268 = vmatprep.subr.mxu0 0.0
    %269 = vmatpush1.msra.mxu0 %v151
    %270 = vmatprep.subr.mxu0 0.0
    %271 = vmatpush1.msra.mxu0 %v152
    %272 = vmatprep.subr.mxu0 0.0
    %273 = vmatpush1.msra.mxu0 0.0
    %274 = vmatprep.subr.mxu0 0.0
    %275 = vmatpush1.msra.mxu0 0.0
    %276 = vmatprep.subr.mxu0 0.0
    %277 = vmatpush1.msra.mxu0 0.0
    %278 = vmatprep.subr.mxu0 0.0
    %279 = vmatpush1.msra.mxu0 0.0
    %280 = vmatprep.subr.mxu0 0.0
    %281 = vmatpush1.msra.mxu0 0.0
    %282 = vmatprep.subr.mxu0 0.0
    %283 = vmatpush1.msra.mxu0 0.0
    %284 = vmatprep.subr.mxu0 0.0
    %285 = vmatpush1.msra.mxu0 0.0
    %286 = vmatprep.subr.mxu0 0.0
    %287 = vmatpush1.msra.mxu0 0.0
    %288 = vmatprep.subr.mxu0 0.0
    %289 = vmatpush1.msra.mxu0 0.0
    %290 = vmatprep.subr.mxu0 0.0
    %291 = vmatpush1.msra.mxu0 0.0
    %292 = vmatprep.subr.mxu0 0.0
    %293 = vmatpush1.msra.mxu0 0.0
    %294 = vmatprep.subr.mxu0 0.0
    %295 = vmatpush1.msra.mxu0 0.0
    %296 = vmatprep.subr.mxu0 0.0
    %297 = vmatpush1.msra.mxu0 0.0
    %298 = vmatprep.subr.mxu0 0.0
    %299 = vmatpush1.msra.mxu0 0.0
    %300 = vmatprep.subr.mxu0 0.0
    %301 = vmatpush1.msra.mxu0 0.0
    %302 = vmatprep.subr.mxu0 0.0
    %303 = vmatpush1.msra.mxu0 0.0
    %304 = vmatprep.subr.mxu0 0.0
    %305 = vmatpush1.msra.mxu0 0.0
    %306 = vmatprep.subr.mxu0 0.0
    %307 = vmatpush1.msra.mxu0 0.0
    %308 = vmatprep.subr.mxu0 0.0
    %309 = vmatpush1.msra.mxu0 0.0
    %310 = vmatprep.subr.mxu0 0.0
    %311 = vmatpush1.msra.mxu0 0.0
    %312 = vmatprep.subr.mxu0 0.0
    %313 = vmatpush1.msra.mxu0 0.0
    %314 = vmatprep.subr.mxu0 0.0
    %315 = vmatpush1.msra.mxu0 0.0
    %316 = vmatprep.subr.mxu0 0.0
    %317 = vmatpush1.msra.mxu0 0.0
    %318 = vmatprep.subr.mxu0 0.0
    %319 = vmatpush1.msra.mxu0 0.0
    %320 = vmatprep.subr.mxu0 0.0
    %321 = vmatpush1.msra.mxu0 0.0
    %322 = vmatprep.subr.mxu0 0.0
    %323 = vmatpush1.msra.mxu0 0.0
    %324 = vmatprep.subr.mxu0 0.0
    %325 = vmatpush1.msra.mxu0 0.0
    %326 = vmatprep.subr.mxu0 0.0
    %327 = vmatpush1.msra.mxu0 0.0
    %328 = vmatprep.mubr.f32.mxu0 0.0
    %329 = vmatmul.mubr.f32.gmra.mrb[0].mxu0 %v262
    %v330 = vpop.f32.mrb[0].mxu0
    %v331 = vadd.f32 %v153, %v330
    %v332 = vpop.f32.mrb[0].mxu0
    %333 = vdwg.mxu0
    %v335 = vrot.slane %v331, 7
    %v337 = vadd.f32 %v146, %v335
    %v338 = vmul.f32 %v337, 0.5
    %v339 = vtanh.pop %v338
    %v340 = vadd.f32 %v339, 1.0
    %v341 = vmul.f32 %v340, 0.5
    %342 = vrot.lane.b32.xlu0 %v335, 64
    %v343 = vpop.permute.xlu0 %342
    %v345 = vmul.f32 %v341, %v343
    %347 = vrot.lane.b32.xlu0 %v345, 64
    %v348 = vpop.permute.xlu0 %347
    %v350 = vadd.f32 %v146, %v348
    %v351 = vtanh.pop %v350
    %v352 = vsub.f32 1.0, %v341
    %354 = vrot.lane.b32.xlu0 %v351, 96
    %v355 = vpop.permute.xlu0 %354
    %v357 = vmul.f32 %v352, %v355
    %v358 = vrot.slane %v258, 7
    %v360 = vmul.f32 %v341, %v358
    %v361 = vadd.f32 %v357, %v360
    %v363 = vrot.slane %v361, 1
    %364 = vrot.lane.b32.xlu0 %v363, 96
    %v365 = vpop.permute.xlu0 %364
    %v366 = vsel %vm75, %v365, 0
    %368 = vmatprep.subr.mxu0 0.0
    %369 = vmatpush1.msra.mxu0 %v149
    %370 = vmatprep.subr.mxu0 0.0
    %371 = vmatpush1.msra.mxu0 %v150
    %372 = vmatprep.subr.mxu0 0.0
    %373 = vmatpush1.msra.mxu0 %v151
    %374 = vmatprep.subr.mxu0 0.0
    %375 = vmatpush1.msra.mxu0 %v152
    %376 = vmatprep.subr.mxu0 0.0
    %377 = vmatpush1.msra.mxu0 0.0
    %378 = vmatprep.subr.mxu0 0.0
    %379 = vmatpush1.msra.mxu0 0.0
    %380 = vmatprep.subr.mxu0 0.0
    %381 = vmatpush1.msra.mxu0 0.0
    %382 = vmatprep.subr.mxu0 0.0
    %383 = vmatpush1.msra.mxu0 0.0
    %384 = vmatprep.subr.mxu0 0.0
    %385 = vmatpush1.msra.mxu0 0.0
    %386 = vmatprep.subr.mxu0 0.0
    %387 = vmatpush1.msra.mxu0 0.0
    %388 = vmatprep.subr.mxu0 0.0
    %389 = vmatpush1.msra.mxu0 0.0
    %390 = vmatprep.subr.mxu0 0.0
    %391 = vmatpush1.msra.mxu0 0.0
    %392 = vmatprep.subr.mxu0 0.0
    %393 = vmatpush1.msra.mxu0 0.0
    %394 = vmatprep.subr.mxu0 0.0
    %395 = vmatpush1.msra.mxu0 0.0
    %396 = vmatprep.subr.mxu0 0.0
    %397 = vmatpush1.msra.mxu0 0.0
    %398 = vmatprep.subr.mxu0 0.0
    %399 = vmatpush1.msra.mxu0 0.0
    %400 = vmatprep.subr.mxu0 0.0
    %401 = vmatpush1.msra.mxu0 0.0
    %402 = vmatprep.subr.mxu0 0.0
    %403 = vmatpush1.msra.mxu0 0.0
    %404 = vmatprep.subr.mxu0 0.0
    %405 = vmatpush1.msra.mxu0 0.0
    %406 = vmatprep.subr.mxu0 0.0
    %407 = vmatpush1.msra.mxu0 0.0
    %408 = vmatprep.subr.mxu0 0.0
    %409 = vmatpush1.msra.mxu0 0.0
    %410 = vmatprep.subr.mxu0 0.0
    %411 = vmatpush1.msra.mxu0 0.0
    %412 = vmatprep.subr.mxu0 0.0
    %413 = vmatpush1.msra.mxu0 0.0
    %414 = vmatprep.subr.mxu0 0.0
    %415 = vmatpush1.msra.mxu0 0.0
    %416 = vmatprep.subr.mxu0 0.0
    %417 = vmatpush1.msra.mxu0 0.0
    %418 = vmatprep.subr.mxu0 0.0
    %419 = vmatpush1.msra.mxu0 0.0
    %420 = vmatprep.subr.mxu0 0.0
    %421 = vmatpush1.msra.mxu0 0.0
    %422 = vmatprep.subr.mxu0 0.0
    %423 = vmatpush1.msra.mxu0 0.0
    %424 = vmatprep.subr.mxu0 0.0
    %425 = vmatpush1.msra.mxu0 0.0
    %426 = vmatprep.subr.mxu0 0.0
    %427 = vmatpush1.msra.mxu0 0.0
    %428 = vmatprep.subr.mxu0 0.0
    %429 = vmatpush1.msra.mxu0 0.0
    %430 = vmatprep.subr.mxu0 0.0
    %431 = vmatpush1.msra.mxu0 0.0
    %432 = vmatprep.mubr.f32.mxu0 0.0
    %433 = vmatmul.mubr.f32.gmra.mrb[0].mxu0 %v366
    %v434 = vpop.f32.mrb[0].mxu0
    %v435 = vadd.f32 %v153, %v434
    %v436 = vpop.f32.mrb[0].mxu0
    %437 = vdwg.mxu0
    %v439 = vrot.slane %v435, 6
    %v441 = vadd.f32 %v146, %v439
    %v442 = vmul.f32 %v441, 0.5
    %v443 = vtanh.pop %v442
    %v444 = vadd.f32 %v443, 1.0
    %v445 = vmul.f32 %v444, 0.5
    %446 = vrot.lane.b32.xlu0 %v439, 64
    %v447 = vpop.permute.xlu0 %446
    %v449 = vmul.f32 %v445, %v447
    %451 = vrot.lane.b32.xlu0 %v449, 64
    %v452 = vpop.permute.xlu0 %451
    %v454 = vadd.f32 %v146, %v452
    %v455 = vtanh.pop %v454
    %v456 = vsub.f32 1.0, %v445
    %458 = vrot.lane.b32.xlu0 %v455, 96
    %v459 = vpop.permute.xlu0 %458
    %v461 = vmul.f32 %v456, %v459
    %v462 = vrot.slane %v361, 7
    %v464 = vmul.f32 %v445, %v462
    %v465 = vadd.f32 %v461, %v464
    %v467 = vrot.slane %v465, 2
    %468 = vrot.lane.b32.xlu0 %v467, 96
    %v469 = vpop.permute.xlu0 %468
    %v470 = vsel %vm75, %v469, 0
    %472 = vmatprep.subr.mxu0 0.0
    %473 = vmatpush1.msra.mxu0 %v149
    %474 = vmatprep.subr.mxu0 0.0
    %475 = vmatpush1.msra.mxu0 %v150
    %476 = vmatprep.subr.mxu0 0.0
    %477 = vmatpush1.msra.mxu0 %v151
    %478 = vmatprep.subr.mxu0 0.0
    %479 = vmatpush1.msra.mxu0 %v152
    %480 = vmatprep.subr.mxu0 0.0
    %481 = vmatpush1.msra.mxu0 0.0
    %482 = vmatprep.subr.mxu0 0.0
    %483 = vmatpush1.msra.mxu0 0.0
    %484 = vmatprep.subr.mxu0 0.0
    %485 = vmatpush1.msra.mxu0 0.0
    %486 = vmatprep.subr.mxu0 0.0
    %487 = vmatpush1.msra.mxu0 0.0
    %488 = vmatprep.subr.mxu0 0.0
    %489 = vmatpush1.msra.mxu0 0.0
    %490 = vmatprep.subr.mxu0 0.0
    %491 = vmatpush1.msra.mxu0 0.0
    %492 = vmatprep.subr.mxu0 0.0
    %493 = vmatpush1.msra.mxu0 0.0
    %494 = vmatprep.subr.mxu0 0.0
    %495 = vmatpush1.msra.mxu0 0.0
    %496 = vmatprep.subr.mxu0 0.0
    %497 = vmatpush1.msra.mxu0 0.0
    %498 = vmatprep.subr.mxu0 0.0
    %499 = vmatpush1.msra.mxu0 0.0
    %500 = vmatprep.subr.mxu0 0.0
    %501 = vmatpush1.msra.mxu0 0.0
    %502 = vmatprep.subr.mxu0 0.0
    %503 = vmatpush1.msra.mxu0 0.0
    %504 = vmatprep.subr.mxu0 0.0
    %505 = vmatpush1.msra.mxu0 0.0
    %506 = vmatprep.subr.mxu0 0.0
    %507 = vmatpush1.msra.mxu0 0.0
    %508 = vmatprep.subr.mxu0 0.0
    %509 = vmatpush1.msra.mxu0 0.0
    %510 = vmatprep.subr.mxu0 0.0
    %511 = vmatpush1.msra.mxu0 0.0
    %512 = vmatprep.subr.mxu0 0.0
    %513 = vmatpush1.msra.mxu0 0.0
    %514 = vmatprep.subr.mxu0 0.0
    %515 = vmatpush1.msra.mxu0 0.0
    %516 = vmatprep.subr.mxu0 0.0
    %517 = vmatpush1.msra.mxu0 0.0
    %518 = vmatprep.subr.mxu0 0.0
    %519 = vmatpush1.msra.mxu0 0.0
    %520 = vmatprep.subr.mxu0 0.0
    %521 = vmatpush1.msra.mxu0 0.0
    %522 = vmatprep.subr.mxu0 0.0
    %523 = vmatpush1.msra.mxu0 0.0
    %524 = vmatprep.subr.mxu0 0.0
    %525 = vmatpush1.msra.mxu0 0.0
    %526 = vmatprep.subr.mxu0 0.0
    %527 = vmatpush1.msra.mxu0 0.0
    %528 = vmatprep.subr.mxu0 0.0
    %529 = vmatpush1.msra.mxu0 0.0
    %530 = vmatprep.subr.mxu0 0.0
    %531 = vmatpush1.msra.mxu0 0.0
    %532 = vmatprep.subr.mxu0 0.0
    %533 = vmatpush1.msra.mxu0 0.0
    %534 = vmatprep.subr.mxu0 0.0
    %535 = vmatpush1.msra.mxu0 0.0
    %536 = vmatprep.mubr.f32.mxu0 0.0
    %537 = vmatmul.mubr.f32.gmra.mrb[0].mxu0 %v470
    %v538 = vpop.f32.mrb[0].mxu0
    %v539 = vadd.f32 %v153, %v538
    %v540 = vpop.f32.mrb[0].mxu0
    %541 = vdwg.mxu0
    %v543 = vrot.slane %v539, 5
    %v545 = vadd.f32 %v146, %v543
    %v546 = vmul.f32 %v545, 0.5
    %v547 = vtanh.pop %v546
    %v548 = vadd.f32 %v547, 1.0
    %v549 = vmul.f32 %v548, 0.5
    %550 = vrot.lane.b32.xlu0 %v543, 64
    %v551 = vpop.permute.xlu0 %550
    %v553 = vmul.f32 %v549, %v551
    %555 = vrot.lane.b32.xlu0 %v553, 64
    %v556 = vpop.permute.xlu0 %555
    %v558 = vadd.f32 %v146, %v556
    %v559 = vtanh.pop %v558
    %v560 = vsub.f32 1.0, %v549
    %562 = vrot.lane.b32.xlu0 %v559, 96
    %v563 = vpop.permute.xlu0 %562
    %v565 = vmul.f32 %v560, %v563
    %v566 = vrot.slane %v465, 7
    %v568 = vmul.f32 %v549, %v566
    %v569 = vadd.f32 %v565, %v568
    %v571 = vrot.slane %v569, 3
    %572 = vrot.lane.b32.xlu0 %v571, 96
    %v573 = vpop.permute.xlu0 %572
    %v574 = vsel %vm75, %v573, 0
    %576 = vmatprep.subr.mxu0 0.0
    %577 = vmatpush1.msra.mxu0 %v149
    %578 = vmatprep.subr.mxu0 0.0
    %579 = vmatpush1.msra.mxu0 %v150
    %580 = vmatprep.subr.mxu0 0.0
    %581 = vmatpush1.msra.mxu0 %v151
    %582 = vmatprep.subr.mxu0 0.0
    %583 = vmatpush1.msra.mxu0 %v152
    %584 = vmatprep.subr.mxu0 0.0
    %585 = vmatpush1.msra.mxu0 0.0
    %586 = vmatprep.subr.mxu0 0.0
    %587 = vmatpush1.msra.mxu0 0.0
    %588 = vmatprep.subr.mxu0 0.0
    %589 = vmatpush1.msra.mxu0 0.0
    %590 = vmatprep.subr.mxu0 0.0
    %591 = vmatpush1.msra.mxu0 0.0
    %592 = vmatprep.subr.mxu0 0.0
    %593 = vmatpush1.msra.mxu0 0.0
    %594 = vmatprep.subr.mxu0 0.0
    %595 = vmatpush1.msra.mxu0 0.0
    %596 = vmatprep.subr.mxu0 0.0
    %597 = vmatpush1.msra.mxu0 0.0
    %598 = vmatprep.subr.mxu0 0.0
    %599 = vmatpush1.msra.mxu0 0.0
    %600 = vmatprep.subr.mxu0 0.0
    %601 = vmatpush1.msra.mxu0 0.0
    %602 = vmatprep.subr.mxu0 0.0
    %603 = vmatpush1.msra.mxu0 0.0
    %604 = vmatprep.subr.mxu0 0.0
    %605 = vmatpush1.msra.mxu0 0.0
    %606 = vmatprep.subr.mxu0 0.0
    %607 = vmatpush1.msra.mxu0 0.0
    %608 = vmatprep.subr.mxu0 0.0
    %609 = vmatpush1.msra.mxu0 0.0
    %610 = vmatprep.subr.mxu0 0.0
    %611 = vmatpush1.msra.mxu0 0.0
    %612 = vmatprep.subr.mxu0 0.0
    %613 = vmatpush1.msra.mxu0 0.0
    %614 = vmatprep.subr.mxu0 0.0
    %615 = vmatpush1.msra.mxu0 0.0
    %616 = vmatprep.subr.mxu0 0.0
    %617 = vmatpush1.msra.mxu0 0.0
    %618 = vmatprep.subr.mxu0 0.0
    %619 = vmatpush1.msra.mxu0 0.0
    %620 = vmatprep.subr.mxu0 0.0
    %621 = vmatpush1.msra.mxu0 0.0
    %622 = vmatprep.subr.mxu0 0.0
    %623 = vmatpush1.msra.mxu0 0.0
    %624 = vmatprep.subr.mxu0 0.0
    %625 = vmatpush1.msra.mxu0 0.0
    %626 = vmatprep.subr.mxu0 0.0
    %627 = vmatpush1.msra.mxu0 0.0
    %628 = vmatprep.subr.mxu0 0.0
    %629 = vmatpush1.msra.mxu0 0.0
    %630 = vmatprep.subr.mxu0 0.0
    %631 = vmatpush1.msra.mxu0 0.0
    %632 = vmatprep.subr.mxu0 0.0
    %633 = vmatpush1.msra.mxu0 0.0
    %634 = vmatprep.subr.mxu0 0.0
    %635 = vmatpush1.msra.mxu0 0.0
    %636 = vmatprep.subr.mxu0 0.0
    %637 = vmatpush1.msra.mxu0 0.0
    %638 = vmatprep.subr.mxu0 0.0
    %639 = vmatpush1.msra.mxu0 0.0
    %640 = vmatprep.mubr.f32.mxu0 0.0
    %641 = vmatmul.mubr.f32.gmra.mrb[0].mxu0 %v574
    %v642 = vpop.f32.mrb[0].mxu0
    %v643 = vadd.f32 %v153, %v642
    %v644 = vpop.f32.mrb[0].mxu0
    %645 = vdwg.mxu0
    %v647 = vrot.slane %v643, 4
    %v649 = vadd.f32 %v146, %v647
    %v650 = vmul.f32 %v649, 0.5
    %v651 = vtanh.pop %v650
    %v652 = vadd.f32 %v651, 1.0
    %v653 = vmul.f32 %v652, 0.5
    %654 = vrot.lane.b32.xlu0 %v647, 64
    %v655 = vpop.permute.xlu0 %654
    %v657 = vmul.f32 %v653, %v655
    %659 = vrot.lane.b32.xlu0 %v657, 64
    %v660 = vpop.permute.xlu0 %659
    %v662 = vadd.f32 %v146, %v660
    %v663 = vtanh.pop %v662
    %v664 = vsub.f32 1.0, %v653
    %666 = vrot.lane.b32.xlu0 %v663, 96
    %v667 = vpop.permute.xlu0 %666
    %v669 = vmul.f32 %v664, %v667
    %v670 = vrot.slane %v569, 7
    %v672 = vmul.f32 %v653, %v670
    %v673 = vadd.f32 %v669, %v672
    %v675 = vrot.slane %v673, 4
    %676 = vrot.lane.b32.xlu0 %v675, 96
    %v677 = vpop.permute.xlu0 %676
    %v678 = vsel %vm75, %v677, 0
    %680 = vmatprep.subr.mxu0 0.0
    %681 = vmatpush1.msra.mxu0 %v149
    %682 = vmatprep.subr.mxu0 0.0
    %683 = vmatpush1.msra.mxu0 %v150
    %684 = vmatprep.subr.mxu0 0.0
    %685 = vmatpush1.msra.mxu0 %v151
    %686 = vmatprep.subr.mxu0 0.0
    %687 = vmatpush1.msra.mxu0 %v152
    %688 = vmatprep.subr.mxu0 0.0
    %689 = vmatpush1.msra.mxu0 0.0
    %690 = vmatprep.subr.mxu0 0.0
    %691 = vmatpush1.msra.mxu0 0.0
    %692 = vmatprep.subr.mxu0 0.0
    %693 = vmatpush1.msra.mxu0 0.0
    %694 = vmatprep.subr.mxu0 0.0
    %695 = vmatpush1.msra.mxu0 0.0
    %696 = vmatprep.subr.mxu0 0.0
    %697 = vmatpush1.msra.mxu0 0.0
    %698 = vmatprep.subr.mxu0 0.0
    %699 = vmatpush1.msra.mxu0 0.0
    %700 = vmatprep.subr.mxu0 0.0
    %701 = vmatpush1.msra.mxu0 0.0
    %702 = vmatprep.subr.mxu0 0.0
    %703 = vmatpush1.msra.mxu0 0.0
    %704 = vmatprep.subr.mxu0 0.0
    %705 = vmatpush1.msra.mxu0 0.0
    %706 = vmatprep.subr.mxu0 0.0
    %707 = vmatpush1.msra.mxu0 0.0
    %708 = vmatprep.subr.mxu0 0.0
    %709 = vmatpush1.msra.mxu0 0.0
    %710 = vmatprep.subr.mxu0 0.0
    %711 = vmatpush1.msra.mxu0 0.0
    %712 = vmatprep.subr.mxu0 0.0
    %713 = vmatpush1.msra.mxu0 0.0
    %714 = vmatprep.subr.mxu0 0.0
    %715 = vmatpush1.msra.mxu0 0.0
    %716 = vmatprep.subr.mxu0 0.0
    %717 = vmatpush1.msra.mxu0 0.0
    %718 = vmatprep.subr.mxu0 0.0
    %719 = vmatpush1.msra.mxu0 0.0
    %720 = vmatprep.subr.mxu0 0.0
    %721 = vmatpush1.msra.mxu0 0.0
    %722 = vmatprep.subr.mxu0 0.0
    %723 = vmatpush1.msra.mxu0 0.0
    %724 = vmatprep.subr.mxu0 0.0
    %725 = vmatpush1.msra.mxu0 0.0
    %726 = vmatprep.subr.mxu0 0.0
    %727 = vmatpush1.msra.mxu0 0.0
    %728 = vmatprep.subr.mxu0 0.0
    %729 = vmatpush1.msra.mxu0 0.0
    %730 = vmatprep.subr.mxu0 0.0
    %731 = vmatpush1.msra.mxu0 0.0
    %732 = vmatprep.subr.mxu0 0.0
    %733 = vmatpush1.msra.mxu0 0.0
    %734 = vmatprep.subr.mxu0 0.0
    %735 = vmatpush1.msra.mxu0 0.0
    %736 = vmatprep.subr.mxu0 0.0
    %737 = vmatpush1.msra.mxu0 0.0
    %738 = vmatprep.subr.mxu0 0.0
    %739 = vmatpush1.msra.mxu0 0.0
    %740 = vmatprep.subr.mxu0 0.0
    %741 = vmatpush1.msra.mxu0 0.0
    %742 = vmatprep.subr.mxu0 0.0
    %743 = vmatpush1.msra.mxu0 0.0
    %744 = vmatprep.mubr.f32.mxu0 0.0
    %745 = vmatmul.mubr.f32.gmra.mrb[0].mxu0 %v678
    %v746 = vpop.f32.mrb[0].mxu0
    %v747 = vadd.f32 %v153, %v746
    %v748 = vpop.f32.mrb[0].mxu0
    %749 = vdwg.mxu0
    %v751 = vrot.slane %v747, 3
    %v753 = vadd.f32 %v146, %v751
    %v754 = vmul.f32 %v753, 0.5
    %v755 = vtanh.pop %v754
    %v756 = vadd.f32 %v755, 1.0
    %v757 = vmul.f32 %v756, 0.5
    %758 = vrot.lane.b32.xlu0 %v751, 64
    %v759 = vpop.permute.xlu0 %758
    %v761 = vmul.f32 %v757, %v759
    %763 = vrot.lane.b32.xlu0 %v761, 64
    %v764 = vpop.permute.xlu0 %763
    %v766 = vadd.f32 %v146, %v764
    %v767 = vtanh.pop %v766
    %v768 = vsub.f32 1.0, %v757
    %770 = vrot.lane.b32.xlu0 %v767, 96
    %v771 = vpop.permute.xlu0 %770
    %v773 = vmul.f32 %v768, %v771
    %v774 = vrot.slane %v673, 7
    %v776 = vmul.f32 %v757, %v774
    %v777 = vadd.f32 %v773, %v776
    %v779 = vrot.slane %v777, 5
    %780 = vrot.lane.b32.xlu0 %v779, 96
    %v781 = vpop.permute.xlu0 %780
    %v782 = vsel %vm75, %v781, 0
    %784 = vmatprep.subr.mxu0 0.0
    %785 = vmatpush1.msra.mxu0 %v149
    %786 = vmatprep.subr.mxu0 0.0
    %787 = vmatpush1.msra.mxu0 %v150
    %788 = vmatprep.subr.mxu0 0.0
    %789 = vmatpush1.msra.mxu0 %v151
    %790 = vmatprep.subr.mxu0 0.0
    %791 = vmatpush1.msra.mxu0 %v152
    %792 = vmatprep.subr.mxu0 0.0
    %793 = vmatpush1.msra.mxu0 0.0
    %794 = vmatprep.subr.mxu0 0.0
    %795 = vmatpush1.msra.mxu0 0.0
    %796 = vmatprep.subr.mxu0 0.0
    %797 = vmatpush1.msra.mxu0 0.0
    %798 = vmatprep.subr.mxu0 0.0
    %799 = vmatpush1.msra.mxu0 0.0
    %800 = vmatprep.subr.mxu0 0.0
    %801 = vmatpush1.msra.mxu0 0.0
    %802 = vmatprep.subr.mxu0 0.0
    %803 = vmatpush1.msra.mxu0 0.0
    %804 = vmatprep.subr.mxu0 0.0
    %805 = vmatpush1.msra.mxu0 0.0
    %806 = vmatprep.subr.mxu0 0.0
    %807 = vmatpush1.msra.mxu0 0.0
    %808 = vmatprep.subr.mxu0 0.0
    %809 = vmatpush1.msra.mxu0 0.0
    %810 = vmatprep.subr.mxu0 0.0
    %811 = vmatpush1.msra.mxu0 0.0
    %812 = vmatprep.subr.mxu0 0.0
    %813 = vmatpush1.msra.mxu0 0.0
    %814 = vmatprep.subr.mxu0 0.0
    %815 = vmatpush1.msra.mxu0 0.0
    %816 = vmatprep.subr.mxu0 0.0
    %817 = vmatpush1.msra.mxu0 0.0
    %818 = vmatprep.subr.mxu0 0.0
    %819 = vmatpush1.msra.mxu0 0.0
    %820 = vmatprep.subr.mxu0 0.0
    %821 = vmatpush1.msra.mxu0 0.0
    %822 = vmatprep.subr.mxu0 0.0
    %823 = vmatpush1.msra.mxu0 0.0
    %824 = vmatprep.subr.mxu0 0.0
    %825 = vmatpush1.msra.mxu0 0.0
    %826 = vmatprep.subr.mxu0 0.0
    %827 = vmatpush1.msra.mxu0 0.0
    %828 = vmatprep.subr.mxu0 0.0
    %829 = vmatpush1.msra.mxu0 0.0
    %830 = vmatprep.subr.mxu0 0.0
    %831 = vmatpush1.msra.mxu0 0.0
    %832 = vmatprep.subr.mxu0 0.0
    %833 = vmatpush1.msra.mxu0 0.0
    %834 = vmatprep.subr.mxu0 0.0
    %835 = vmatpush1.msra.mxu0 0.0
    %836 = vmatprep.subr.mxu0 0.0
    %837 = vmatpush1.msra.mxu0 0.0
    %838 = vmatprep.subr.mxu0 0.0
    %839 = vmatpush1.msra.mxu0 0.0
    %840 = vmatprep.subr.mxu0 0.0
    %841 = vmatpush1.msra.mxu0 0.0
    %842 = vmatprep.subr.mxu0 0.0
    %843 = vmatpush1.msra.mxu0 0.0
    %844 = vmatprep.subr.mxu0 0.0
    %845 = vmatpush1.msra.mxu0 0.0
    %846 = vmatprep.subr.mxu0 0.0
    %847 = vmatpush1.msra.mxu0 0.0
    %848 = vmatprep.mubr.f32.mxu0 0.0
    %849 = vmatmul.mubr.f32.gmra.mrb[0].mxu0 %v782
    %v850 = vpop.f32.mrb[0].mxu0
    %v851 = vadd.f32 %v153, %v850
    %v852 = vpop.f32.mrb[0].mxu0
    %853 = vdwg.mxu0
    %v855 = vrot.slane %v851, 2
    %v857 = vadd.f32 %v146, %v855
    %v858 = vmul.f32 %v857, 0.5
    %v859 = vtanh.pop %v858
    %v860 = vadd.f32 %v859, 1.0
    %v861 = vmul.f32 %v860, 0.5
    %862 = vrot.lane.b32.xlu0 %v855, 64
    %v863 = vpop.permute.xlu0 %862
    %v865 = vmul.f32 %v861, %v863
    %867 = vrot.lane.b32.xlu0 %v865, 64
    %v868 = vpop.permute.xlu0 %867
    %v870 = vadd.f32 %v146, %v868
    %v871 = vtanh.pop %v870
    %v872 = vsub.f32 1.0, %v861
    %874 = vrot.lane.b32.xlu0 %v871, 96
    %v875 = vpop.permute.xlu0 %874
    %v877 = vmul.f32 %v872, %v875
    %v878 = vrot.slane %v777, 7
    %v880 = vmul.f32 %v861, %v878
    %v881 = vadd.f32 %v877, %v880
    %v883 = vrot.slane %v881, 6
    %884 = vrot.lane.b32.xlu0 %v883, 96
    %v885 = vpop.permute.xlu0 %884
    %v886 = vsel %vm75, %v885, 0
    %888 = vmatprep.subr.mxu0 0.0
    %889 = vmatpush1.msra.mxu0 %v149
    %890 = vmatprep.subr.mxu0 0.0
    %891 = vmatpush1.msra.mxu0 %v150
    %892 = vmatprep.subr.mxu0 0.0
    %893 = vmatpush1.msra.mxu0 %v151
    %894 = vmatprep.subr.mxu0 0.0
    %895 = vmatpush1.msra.mxu0 %v152
    %896 = vmatprep.subr.mxu0 0.0
    %897 = vmatpush1.msra.mxu0 0.0
    %898 = vmatprep.subr.mxu0 0.0
    %899 = vmatpush1.msra.mxu0 0.0
    %900 = vmatprep.subr.mxu0 0.0
    %901 = vmatpush1.msra.mxu0 0.0
    %902 = vmatprep.subr.mxu0 0.0
    %903 = vmatpush1.msra.mxu0 0.0
    %904 = vmatprep.subr.mxu0 0.0
    %905 = vmatpush1.msra.mxu0 0.0
    %906 = vmatprep.subr.mxu0 0.0
    %907 = vmatpush1.msra.mxu0 0.0
    %908 = vmatprep.subr.mxu0 0.0
    %909 = vmatpush1.msra.mxu0 0.0
    %910 = vmatprep.subr.mxu0 0.0
    %911 = vmatpush1.msra.mxu0 0.0
    %912 = vmatprep.subr.mxu0 0.0
    %913 = vmatpush1.msra.mxu0 0.0
    %914 = vmatprep.subr.mxu0 0.0
    %915 = vmatpush1.msra.mxu0 0.0
    %916 = vmatprep.subr.mxu0 0.0
    %917 = vmatpush1.msra.mxu0 0.0
    %918 = vmatprep.subr.mxu0 0.0
    %919 = vmatpush1.msra.mxu0 0.0
    %920 = vmatprep.subr.mxu0 0.0
    %921 = vmatpush1.msra.mxu0 0.0
    %922 = vmatprep.subr.mxu0 0.0
    %923 = vmatpush1.msra.mxu0 0.0
    %924 = vmatprep.subr.mxu0 0.0
    %925 = vmatpush1.msra.mxu0 0.0
    %926 = vmatprep.subr.mxu0 0.0
    %927 = vmatpush1.msra.mxu0 0.0
    %928 = vmatprep.subr.mxu0 0.0
    %929 = vmatpush1.msra.mxu0 0.0
    %930 = vmatprep.subr.mxu0 0.0
    %931 = vmatpush1.msra.mxu0 0.0
    %932 = vmatprep.subr.mxu0 0.0
    %933 = vmatpush1.msra.mxu0 0.0
    %934 = vmatprep.subr.mxu0 0.0
    %935 = vmatpush1.msra.mxu0 0.0
    %936 = vmatprep.subr.mxu0 0.0
    %937 = vmatpush1.msra.mxu0 0.0
    %938 = vmatprep.subr.mxu0 0.0
    %939 = vmatpush1.msra.mxu0 0.0
    %940 = vmatprep.subr.mxu0 0.0
    %941 = vmatpush1.msra.mxu0 0.0
    %942 = vmatprep.subr.mxu0 0.0
    %943 = vmatpush1.msra.mxu0 0.0
    %944 = vmatprep.subr.mxu0 0.0
    %945 = vmatpush1.msra.mxu0 0.0
    %946 = vmatprep.subr.mxu0 0.0
    %947 = vmatpush1.msra.mxu0 0.0
    %948 = vmatprep.subr.mxu0 0.0
    %949 = vmatpush1.msra.mxu0 0.0
    %950 = vmatprep.subr.mxu0 0.0
    %951 = vmatpush1.msra.mxu0 0.0
    %952 = vmatprep.mubr.f32.mxu0 0.0
    %953 = vmatmul.mubr.f32.gmra.mrb[0].mxu0 %v886
    %v954 = vpop.f32.mrb[0].mxu0
    %v955 = vadd.f32 %v153, %v954
    %v956 = vpop.f32.mrb[0].mxu0
    %957 = vdwg.mxu0
    %v959 = vrot.slane %v955, 1
    %v961 = vadd.f32 %v146, %v959
    %v962 = vmul.f32 %v961, 0.5
    %v963 = vtanh.pop %v962
    %v964 = vadd.f32 %v963, 1.0
    %v965 = vmul.f32 %v964, 0.5
    %966 = vrot.lane.b32.xlu0 %v959, 64
    %v967 = vpop.permute.xlu0 %966
    %v969 = vmul.f32 %v965, %v967
    %971 = vrot.lane.b32.xlu0 %v969, 64
    %v972 = vpop.permute.xlu0 %971
    %v974 = vadd.f32 %v146, %v972
    %v975 = vtanh.pop %v974
    %v976 = vsub.f32 1.0, %v965
    %978 = vrot.lane.b32.xlu0 %v975, 96
    %v979 = vpop.permute.xlu0 %978
    %v981 = vmul.f32 %v976, %v979
    %v982 = vrot.slane %v881, 7
    %v984 = vmul.f32 %v965, %v982
    %v985 = vadd.f32 %v981, %v984
    %vm986 = vcmask 1040384
    %v987 = vsel %vm986, %v258, %v361
    %vm988 = vcmask 1041408
    %v989 = vsel %vm988, %v987, %v465
    %vm990 = vcmask 1042432
    %v991 = vsel %vm990, %v989, %v569
    %vm992 = vcmask 1043456
    %v993 = vsel %vm992, %v991, %v673
    %vm994 = vcmask 1044480
    %v995 = vsel %vm994, %v993, %v777
    %vm996 = vcmask 1045504
    %v997 = vsel %vm996, %v995, %v881
    %vm998 = vcmask 1046528
    %v999 = vsel %vm998, %v997, %v985
    %1001 = vrot.lane.b32.xlu0 %v999, 96
    %v1002 = vpop.permute.xlu0 %1001
    %1004 = vst.msk [vmem:[#allocation8] sm:$0xff] %vm75, %v1002
    // Predicated region
    $region38: #{tpu_custom_call.1} parent=1 // pred_check
      _
    $region39: #{tpu_custom_call.1} parent=1 // pred_check_branch
      %1006 = sbr.rel (0) target = $region41
    $region40: #{tpu_custom_call.1} parent=1 // pred_region
      %s1008 = ssub.s32 128, 128
      %1009 = vsyncadd [#allocation4], %s1008
      %s1011 = sshll.u32 [#allocation8], 4
      %s1012 = int_to_ptr.vmem [resolvable:$true] %s1011
      %1014 = dma.vmem_to_hbm [thread:$0]  %s1012, 128, %s6, [#allocation4]
    $region41: #{tpu_custom_call.1} parent=1 // pred_fallthru
      _
    // Predicated region
    $region42: #{tpu_custom_call.1} parent=1 // pred_check
      _
    $region43: #{tpu_custom_call.1} parent=1 // pred_check_branch
      %1016 = sbr.rel (0) target = $region45
    $region44: #{tpu_custom_call.1} parent=1 // pred_region
      %1017 = dma.done [#allocation4], 128
    $region45: #{tpu_custom_call.1} parent=1 // pred_fallthru
      _
    %1018 = vsyncpa [#allocation3], 1
    %1019 = vsyncpa [#allocation6], 1
    %1020 = vsyncpa [#allocation4], 1

</llo_original>
